<compile_context>
chip_gen: v7x
topology: tpu7x:2x2x1
jax: 0.10.0
libtpu: 0.0.40
codegen_flags: <defaults>
</compile_context>

<pallas_src>
import functools
import math

import jax
import jax.numpy as jnp
from jax import lax
from jax.experimental import pallas as pl
from jax.experimental.pallas import tpu as pltpu

BN_EPS = 1e-5


def _round_up(x, m):
    return (x + m - 1) // m * m


# ----------------------------- Pallas kernels -----------------------------

def _mm_bn_stats_kernel(a_ref, w_ref, y_ref, s_ref, *, m_real, tm):
    """1x1-conv matmul tile (full-K dot) + fused BN channel sum / sumsq.

    grid = (nt, mt): the output-column panel index j is the OUTER axis so the
    weight panel block (index (0, j)) stays resident in VMEM across the inner
    M sweep -> 1x weight HBM traffic per layer.
    """
    i = pl.program_id(1)
    acc = jnp.dot(a_ref[...], w_ref[...], preferred_element_type=jnp.float32)
    y_ref[...] = acc.astype(y_ref.dtype)
    # Mask ragged rows so BN statistics are exact.
    row = lax.broadcasted_iota(jnp.int32, acc.shape, 0) + i * tm
    acc = jnp.where(row < m_real, acc, 0.0)
    s_ref[...] = jnp.zeros_like(s_ref)                       # 8-sublane padded stats tile
    s_ref[0:1, :] = jnp.sum(acc, axis=0, keepdims=True)
    s_ref[1:2, :] = jnp.sum(acc * acc, axis=0, keepdims=True)


def _stats_kernel(x_ref, s_ref, *, m_real, tm):
    """Channel sum / sumsq reduction for conv outputs produced outside Pallas."""
    i = pl.program_id(0)

    @pl.when(i == 0)
    def _():
        s_ref[...] = jnp.zeros_like(s_ref)

    x = x_ref[...].astype(jnp.float32)
    row = lax.broadcasted_iota(jnp.int32, x.shape, 0) + i * tm
    x = jnp.where(row < m_real, x, 0.0)
    s_ref[0:1, :] += jnp.sum(x, axis=0, keepdims=True)
    s_ref[1:2, :] += jnp.sum(x * x, axis=0, keepdims=True)


def _scale_shift_kernel(x_ref, sc_ref, sh_ref, o_ref, *, relu):
    """Row-tiled BN normalize (+optional ReLU) from global (1,C) scale / shift."""
    y = x_ref[...].astype(jnp.float32) * sc_ref[...] + sh_ref[...]
    if relu:
        y = jnp.maximum(y, 0.0)
    o_ref[...] = y.astype(o_ref.dtype)


def _pool_sum_kernel(x_ref, o_ref, *, hw_real, thw):
    """Per-image channel sums over HW tiles (masked ragged edge)."""
    h = pl.program_id(1)

    @pl.when(h == 0)
    def _():
        o_ref[...] = jnp.zeros_like(o_ref)

    x = x_ref[0].astype(jnp.float32)
    row = lax.broadcasted_iota(jnp.int32, x.shape, 0) + h * thw
    x = jnp.where(row < hw_real, x, 0.0)
    o_ref[...] += jnp.sum(x, axis=0, keepdims=True)[None]


def _se_gate_kernel(ps_ref, sc_ref, sh_ref, w1_ref, b1_ref, w2_ref, b2_ref, g_ref, *, inv_hw):
    """Batched (M=B) SE gate: apply fused conv3-BN to the pooled mean, fc1->ReLU->fc2->sigmoid."""
    pooled = jnp.squeeze(ps_ref[...], axis=1) * inv_hw        # (B, C) raw conv3 mean
    pooled = pooled * sc_ref[...] + sh_ref[...]               # fused bn3
    hid = jnp.dot(pooled.astype(jnp.bfloat16), w1_ref[...],
                  preferred_element_type=jnp.float32) + b1_ref[...]
    hid = jnp.maximum(hid, 0.0)
    g = jnp.dot(hid.astype(jnp.bfloat16), w2_ref[...],
                preferred_element_type=jnp.float32) + b2_ref[...]
    g_ref[...] = (1.0 / (1.0 + jnp.exp(-g)))[:, None, :]


def _se_scale_add_kernel(y_ref, r_ref, g_ref, sc3_ref, sh3_ref, scr_ref, shr_ref, o_ref):
    """Fused bn3 + SE scaling + (fused-BN) residual add + ReLU."""
    y = y_ref[0].astype(jnp.float32) * sc3_ref[...] + sh3_ref[...]
    r = r_ref[0].astype(jnp.float32) * scr_ref[...] + shr_ref[...]
    o_ref[...] = jnp.maximum(y * g_ref[0] + r, 0.0)[None].astype(o_ref.dtype)


def _classifier_kernel(ps_ref, w_ref, b_ref, y_ref, f_ref, *, inv_hw):
    """Batched head: global-avg-pool features + Linear classifier (M=B)."""
    feats = jnp.squeeze(ps_ref[...], axis=1) * inv_hw          # (B, C)
    f_ref[...] = feats
    y_ref[...] = jnp.dot(feats.astype(jnp.bfloat16), w_ref[...],
                         preferred_element_type=jnp.float32) + b_ref[...]


# ----------------------------- wrappers -----------------------------

def _bn_scale_shift(ssum, ssq, count, gamma, beta):
    mean = ssum / count
    var = jnp.maximum(ssq / count - mean * mean, 0.0)
    scale = gamma.astype(jnp.float32) * lax.rsqrt(var + BN_EPS)
    shift = beta.astype(jnp.float32) - mean * scale
    return scale.reshape(1, -1), shift.reshape(1, -1)


def _pick_tiles(M, N):
    tm = M if M <= 1024 else 1024
    if N <= 512:
        tn = N
    elif N % 1024 == 0:
        tn = 1024
    else:
        tn = 512
    mt = -(-M // tm)
    nt = N // tn
    # keep >=2 grid tiles when cheap, so v7x can use both TensorCores
    if mt == 1 and nt == 1 and N >= 256:
        tn = N // 2
        nt = 2
    return tm, mt, tn, nt


@jax.jit
def _conv1x1_bn(a, w, gamma, beta):
    """1x1 conv as tiled MXU matmul with fused BN batch statistics.

    Returns the *raw* (un-normalized) bf16 output plus the global per-channel
    train-mode BN scale / shift (biased variance, eps=1e-5).
    """
    M, K = a.shape
    N = w.shape[1]
    tm, mt, tn, nt = _pick_tiles(M, N)

    y_raw, stats = pl.pallas_call(
        functools.partial(_mm_bn_stats_kernel, m_real=M, tm=tm),
        out_shape=(jax.ShapeDtypeStruct((M, N), jnp.bfloat16),
                   jax.ShapeDtypeStruct((mt * 8, N), jnp.float32)),
        grid=(nt, mt),
        in_specs=[pl.BlockSpec((tm, K), lambda j, i: (i, 0)),
                  pl.BlockSpec((K, tn), lambda j, i: (0, j))],   # weight panel stays resident
        out_specs=(pl.BlockSpec((tm, tn), lambda j, i: (i, j)),
                   pl.BlockSpec((8, tn), lambda j, i: (i, j))),
        compiler_params=pltpu.CompilerParams(
            dimension_semantics=("parallel", "parallel"),
            vmem_limit_bytes=48 * 1024 * 1024),
    )(a.astype(jnp.bfloat16), w)

    s = stats.reshape(mt, 8, N)
    ssum = jnp.sum(s[:, 0, :], axis=0)
    ssq = jnp.sum(s[:, 1, :], axis=0)
    scale, shift = _bn_scale_shift(ssum, ssq, M, gamma, beta)
    return y_raw, scale, shift


def _pick_rows(M, C):
    cap = max(8, (2 * 1024 * 1024) // (C * 2))       # ~2 MiB bf16 per input block
    cap = min(cap, 1024)
    if M <= cap:
        return M, 1
    tm = (cap // 8) * 8
    return tm, -(-M // tm)


@jax.jit
def _batch_stats(y_flat):
    M, C = y_flat.shape
    fold = (C == 64 and M % 2 == 0)                  # lane-dense view for the 64-channel path
    if fold:
        y_flat = y_flat.reshape(M // 2, 128)
    Mv, Cv = y_flat.shape
    tm, mt = _pick_rows(Mv, Cv)
    s = pl.pallas_call(
        functools.partial(_stats_kernel, m_real=Mv, tm=tm),
        out_shape=jax.ShapeDtypeStruct((8, Cv), jnp.float32),
        grid=(mt,),
        in_specs=[pl.BlockSpec((tm, Cv), lambda i: (i, 0))],
        out_specs=pl.BlockSpec((8, Cv), lambda i: (0, 0)),
        compiler_params=pltpu.CompilerParams(dimension_semantics=("arbitrary",)),
    )(y_flat)
    ssum, ssq = s[0], s[1]
    if fold:
        ssum = ssum[:64] + ssum[64:]
        ssq = ssq[:64] + ssq[64:]
    return ssum, ssq


@functools.partial(jax.jit, static_argnames=("relu",))
def _bn_apply(y_raw, scale, shift, *, relu):
    M, C = y_raw.shape
    fold = (C == 64 and M % 2 == 0)
    if fold:
        y_raw = y_raw.reshape(M // 2, 128)
        scale = jnp.tile(scale, (1, 2))
        shift = jnp.tile(shift, (1, 2))
    Mv, Cv = y_raw.shape
    tm, mt = _pick_rows(Mv, Cv)
    y = pl.pallas_call(
        functools.partial(_scale_shift_kernel, relu=relu),
        out_shape=jax.ShapeDtypeStruct((Mv, Cv), jnp.bfloat16),
        grid=(mt,),
        in_specs=[pl.BlockSpec((tm, Cv), lambda i: (i, 0)),
                  pl.BlockSpec((1, Cv), lambda i: (0, 0)),
                  pl.BlockSpec((1, Cv), lambda i: (0, 0))],
        out_specs=pl.BlockSpec((tm, Cv), lambda i: (i, 0)),
        compiler_params=pltpu.CompilerParams(dimension_semantics=("parallel",)),
    )(y_raw, scale, shift)
    if fold:
        y = y.reshape(M, C)
    return y


@functools.partial(jax.jit, static_argnames=("stride", "pad", "relu"))
def _spatial_conv_bn(x, w, gamma, beta, *, stride, pad, relu):
    # TODO(synk): 3x3/7x7 convs use XLA's native MXU conv (no im2col HBM expansion); an
    #             in-kernel halo-window Pallas conv would additionally fuse the BN stats pass.
    y = lax.conv_general_dilated(
        x.astype(jnp.bfloat16), w,
        window_strides=(stride, stride),
        padding=((pad, pad), (pad, pad)),
        dimension_numbers=("NHWC", "HWIO", "NHWC"))
    B, OH, OW, C = y.shape
    y_flat = y.reshape(B * OH * OW, C)
    ssum, ssq = _batch_stats(y_flat)
    scale, shift = _bn_scale_shift(ssum, ssq, B * OH * OW, gamma, beta)
    y_flat = _bn_apply(y_flat, scale, shift, relu=relu)
    return y_flat.reshape(B, OH, OW, C)


@jax.jit
def _maxpool2d_ceil(x):
    """MaxPool2d(3, stride=2, ceil_mode=True) via two shifted-max stages (no 9x window stack)."""
    # TODO(synk): an in-kernel halo running-max Pallas kernel would cut the remaining traffic.
    k, s = 3, 2
    B, H, W, C = x.shape
    OH = -(-(H - k) // s) + 1
    OW = -(-(W - k) // s) + 1
    if (OH - 1) * s >= H:
        OH -= 1
    if (OW - 1) * s >= W:
        OW -= 1
    ph = max(0, (OH - 1) * s + k - H)
    pw = max(0, (OW - 1) * s + k - W)
    xp = jnp.pad(x, ((0, 0), (0, ph), (0, pw), (0, 0)), constant_values=-jnp.inf)
    col = None
    for kw in range(k):
        v = xp[:, :, kw:kw + (OW - 1) * s + 1:s, :]
        col = v if col is None else jnp.maximum(col, v)
    out = None
    for kh in range(k):
        v = col[:, kh:kh + (OH - 1) * s + 1:s, :, :]
        out = v if out is None else jnp.maximum(out, v)
    return out


@jax.jit
def _se_residual_relu(y3, res, sc3, sh3, scr, shr, w1, b1, w2, b2):
    """SE module with the conv3-BN and residual-BN folded in, then +residual, ReLU."""
    B, HW, C = y3.shape
    thw = HW if HW <= 1024 else 512
    hwt = -(-HW // thw)

    pooled = pl.pallas_call(
        functools.partial(_pool_sum_kernel, hw_real=HW, thw=thw),
        out_shape=jax.ShapeDtypeStruct((B, 1, C), jnp.float32),
        grid=(B, hwt),
        in_specs=[pl.BlockSpec((1, thw, C), lambda b, h: (b, h, 0))],
        out_specs=pl.BlockSpec((1, 1, C), lambda b, h: (b, 0, 0)),
        compiler_params=pltpu.CompilerParams(
            dimension_semantics=("parallel", "arbitrary")),
    )(y3)

    Cr = w1.shape[1]
    gate = pl.pallas_call(
        functools.partial(_se_gate_kernel, inv_hw=1.0 / HW),
        out_shape=jax.ShapeDtypeStruct((B, 1, C), jnp.float32),
        grid=(1,),
        in_specs=[pl.BlockSpec((B, 1, C), lambda i: (0, 0, 0)),
                  pl.BlockSpec((1, C), lambda i: (0, 0)),
                  pl.BlockSpec((1, C), lambda i: (0, 0)),
                  pl.BlockSpec((C, Cr), lambda i: (0, 0)),
                  pl.BlockSpec((1, Cr), lambda i: (0, 0)),
                  pl.BlockSpec((Cr, C), lambda i: (0, 0)),
                  pl.BlockSpec((1, C), lambda i: (0, 0))],
        out_specs=pl.BlockSpec((B, 1, C), lambda i: (0, 0, 0)),
    )(pooled, sc3, sh3, w1, b1, w2, b2)

    out = pl.pallas_call(
        _se_scale_add_kernel,
        out_shape=jax.ShapeDtypeStruct((B, HW, C), jnp.bfloat16),
        grid=(B, hwt),
        in_specs=[pl.BlockSpec((1, thw, C), lambda b, h: (b, h, 0)),
                  pl.BlockSpec((1, thw, C), lambda b, h: (b, h, 0)),
                  pl.BlockSpec((1, 1, C), lambda b, h: (b, 0, 0)),
                  pl.BlockSpec((1, C), lambda b, h: (0, 0)),
                  pl.BlockSpec((1, C), lambda b, h: (0, 0)),
                  pl.BlockSpec((1, C), lambda b, h: (0, 0)),
                  pl.BlockSpec((1, C), lambda b, h: (0, 0))],
        out_specs=pl.BlockSpec((1, thw, C), lambda b, h: (b, h, 0)),
        compiler_params=pltpu.CompilerParams(
            dimension_semantics=("parallel", "parallel")),
    )(y3, res, gate, sc3, sh3, scr, shr)
    return out


@jax.jit
def _head(x, w, b):
    B, H, W, C = x.shape
    HW = H * W
    x3 = x.reshape(B, HW, C)
    thw = HW if HW <= 1024 else 512
    hwt = -(-HW // thw)
    pooled = pl.pallas_call(
        functools.partial(_pool_sum_kernel, hw_real=HW, thw=thw),
        out_shape=jax.ShapeDtypeStruct((B, 1, C), jnp.float32),
        grid=(B, hwt),
        in_specs=[pl.BlockSpec((1, thw, C), lambda bb, h: (bb, h, 0))],
        out_specs=pl.BlockSpec((1, 1, C), lambda bb, h: (bb, 0, 0)),
        compiler_params=pltpu.CompilerParams(
            dimension_semantics=("parallel", "arbitrary")),
    )(x3)
    Np = w.shape[1]
    logits, feats = pl.pallas_call(
        functools.partial(_classifier_kernel, inv_hw=1.0 / HW),
        out_shape=(jax.ShapeDtypeStruct((B, Np), jnp.float32),
                   jax.ShapeDtypeStruct((B, C), jnp.float32)),
        grid=(1,),
        in_specs=[pl.BlockSpec((B, 1, C), lambda i: (0, 0, 0)),
                  pl.BlockSpec((C, Np), lambda i: (0, 0)),
                  pl.BlockSpec((1, Np), lambda i: (0, 0))],
        out_specs=(pl.BlockSpec((B, Np), lambda i: (0, 0)),
                   pl.BlockSpec((B, C), lambda i: (0, 0))),
    )(pooled, w, b)
    return logits, feats


# ----------------------------- bottleneck & forward -----------------------------

def _bottleneck(x, bp, stride):
    B, H, W, Cin = x.shape
    xs = x[:, ::stride, ::stride, :] if stride > 1 else x     # Caffe-style stride in conv1
    _, H1, W1, _ = xs.shape
    M = B * H1 * W1

    # conv1 (1x1) + BN + ReLU
    y1_raw, sc1, sh1 = _conv1x1_bn(xs.reshape(M, Cin), bp['conv1'], *bp['bn1'])
    planes = bp['conv1'].shape[1]
    y1 = _bn_apply(y1_raw, sc1, sh1, relu=True).reshape(B, H1, W1, planes)

    # conv2 (3x3, pad 1) + BN + ReLU  (XLA MXU conv; no im2col materialization)
    y2 = _spatial_conv_bn(y1, bp['conv2'], *bp['bn2'], stride=1, pad=1, relu=True)

    # conv3 (1x1) -> its BN is fused into the SE kernels below (no extra normalize pass)
    C4 = bp['conv3'].shape[1]
    y3_raw, sc3, sh3 = _conv1x1_bn(y2.reshape(M, planes), bp['conv3'], *bp['bn3'])

    if 'down_conv' in bp:
        res_raw, scr, shr = _conv1x1_bn(xs.reshape(M, Cin), bp['down_conv'], *bp['down_bn'])
    else:
        res_raw = x.reshape(M, C4)
        scr = jnp.ones((1, C4), jnp.float32)
        shr = jnp.zeros((1, C4), jnp.float32)

    w1, b1, w2, b2 = bp['se']
    out = _se_residual_relu(y3_raw.reshape(B, H1 * W1, C4),
                            res_raw.reshape(B, H1 * W1, C4),
                            sc3, sh3, scr, shr, w1, b1, w2, b2)
    return out.reshape(B, H1, W1, C4)


def seresnet101_forward(x_nchw, params, training=True):
    x = jnp.transpose(x_nchw, (0, 2, 3, 1)).astype(jnp.bfloat16)   # NCHW -> NHWC

    # layer0: Conv2d(3, 64, k=7, s=2, p=3, bias=False) + BN + ReLU + MaxPool(3, s=2, ceil)
    p0 = params['layer0']
    out = _spatial_conv_bn(x, p0['conv1'], p0['bn1'][0], p0['bn1'][1],
                           stride=2, pad=3, relu=True)
    out = _maxpool2d_ceil(out)

    strides = (1, 2, 2, 2)
    for li in range(4):
        for bi, bp in enumerate(params['layer%d' % (li + 1)]):
            s = strides[li] if bi == 0 else 1
            out = _bottleneck(out, bp, s)

    logits, feats = _head(out, params['cls_w'], params['cls_b'])
    if not training:
        return feats                                        # eval branch: pooled features
    return logits[:, :params['num_classes']]                # training + {'xent'}: logits


# ----------------------------- deterministic parameters -----------------------------

class KeyGen:
    def __init__(self, seed=0):
        self.key = jax.random.PRNGKey(seed)

    def __call__(self):
        self.key, sub = jax.random.split(self.key)
        return sub


def _conv1x1_w(kg, cin, cout):
    std = math.sqrt(2.0 / cin)
    return (jax.random.normal(kg(), (cin, cout), jnp.float32) * std).astype(jnp.bfloat16)


def _convkxk_w(kg, cin, cout, k):
    std = math.sqrt(2.0 / (cin * k * k))
    return (jax.random.normal(kg(), (k, k, cin, cout), jnp.float32) * std).astype(jnp.bfloat16)


def _bn_p(c):
    return (jnp.ones((c,), jnp.float32), jnp.zeros((c,), jnp.float32))


def _se_p(kg, c, reduction):
    cr = c // reduction
    w1 = (jax.random.normal(kg(), (c, cr), jnp.float32) * math.sqrt(1.0 / c)).astype(jnp.bfloat16)
    b1 = jnp.zeros((1, cr), jnp.float32)
    w2 = (jax.random.normal(kg(), (cr, c), jnp.float32) * math.sqrt(1.0 / cr)).astype(jnp.bfloat16)
    b2 = jnp.zeros((1, c), jnp.float32)
    return (w1, b1, w2, b2)


def make_block(kg, inplanes, planes, reduction, has_down):
    p = {
        'conv1': _conv1x1_w(kg, inplanes, planes),
        'bn1': _bn_p(planes),
        'conv2': _convkxk_w(kg, planes, planes, 3),
        'bn2': _bn_p(planes),
        'conv3': _conv1x1_w(kg, planes, planes * 4),
        'bn3': _bn_p(planes * 4),
        'se': _se_p(kg, planes * 4, reduction),
    }
    if has_down:
        p['down_conv'] = _conv1x1_w(kg, inplanes, planes * 4)   # downsample_kernel_size=1
        p['down_bn'] = _bn_p(planes * 4)
    return p


def make_params(kg, num_classes, layers=(3, 4, 23, 3), reduction=16):
    params = {'layer0': {'conv1': _convkxk_w(kg, 3, 64, 7), 'bn1': _bn_p(64)}}
    inplanes = 64
    for li, (planes, blocks) in enumerate(zip((64, 128, 256, 512), layers)):
        stride = 1 if li == 0 else 2
        layer = []
        for bi in range(blocks):
            has_down = (bi == 0) and (stride != 1 or inplanes != planes * 4)
            layer.append(make_block(kg, inplanes, planes, reduction, has_down))
            inplanes = planes * 4
        params['layer%d' % (li + 1)] = layer
    ncp = _round_up(max(num_classes, 1), 128)            # lane-dense classifier output
    cw = jax.random.normal(kg(), (512 * 4, num_classes), jnp.float32) * 0.01
    params['cls_w'] = jnp.pad(cw, ((0, 0), (0, ncp - num_classes))).astype(jnp.bfloat16)
    params['cls_b'] = jnp.zeros((1, ncp), jnp.float32)
    params['num_classes'] = num_classes
    return params


if __name__ == "__main__":
    num_classes = 10
    kg = KeyGen(0)
    params = make_params(kg, num_classes)

    x = jax.random.normal(jax.random.PRNGKey(0), (2, 3, 32, 32), jnp.float32)

    y = seresnet101_forward(x, params, training=True)
    y = jax.block_until_ready(y)

    assert y.shape == (2, num_classes), y.shape
    assert bool(jnp.all(jnp.isfinite(y)))
    print("KERNEL_OK")
</pallas_src>

<mosaic_0001>
module attributes {stable_mosaic.version = 11 : i64} {
  func.func @_stats_kernel(%arg0: i32, %arg1: memref<256x128xbf16, #tpu.memory_space<vmem>>, %arg2: memref<8x128xf32, #tpu.memory_space<vmem>>) attributes {dimension_semantics = [#tpu.dimension_semantics<arbitrary>], iteration_bounds = array<i64: 1>, scalar_prefetch = 0 : i64, scratch_operands = 0 : i64, tpu.core_type = #tpu.core_type<tc>, window_params = [{transform_indices = @transform_0, window_bounds = array<i64: 256, 128>}, {pipeline_mode = #tpu.pipeline_mode<synchronous>, transform_indices = @transform_1, window_bounds = array<i64: 8, 128>}]} {
    %c0_i32 = arith.constant 0 : i32
    %0 = arith.cmpi eq, %arg0, %c0_i32 : i32
    %1 = arith.extui %0 : i1 to i32
    %c0_i32_0 = arith.constant 0 : i32
    %2 = arith.cmpi ne, %1, %c0_i32_0 : i32
    scf.if %2 {
      %cst_12 = arith.constant 0.000000e+00 : f32
      %24 = vector.broadcast %cst_12 : f32 to vector<8x128xf32>
      %c0_13 = arith.constant 0 : index
      %c0_14 = arith.constant 0 : index
      %25 = vector.load %arg2[%c0_13, %c0_14] : memref<8x128xf32, #tpu.memory_space<vmem>>, vector<8x128xf32>
      tpu.vector_store %arg2[%c0_13, %c0_14], %24 {strides = array<i32>} : memref<8x128xf32, #tpu.memory_space<vmem>>, vector<8x128xf32>,
    } else {
    }
    %c0 = arith.constant 0 : index
    %c0_1 = arith.constant 0 : index
    %3 = vector.load %arg1[%c0, %c0_1] : memref<256x128xbf16, #tpu.memory_space<vmem>>, vector<256x128xbf16>
    %4 = arith.extf %3 : vector<256x128xbf16> to vector<256x128xf32>
    %5 = tpu.iota {dimensions = array<i32: 0>} : vector<256x128xi32>
    %c256_i32 = arith.constant 256 : i32
    %6 = arith.muli %arg0, %c256_i32 : i32
    %7 = vector.broadcast %6 : i32 to vector<256x128xi32>
    %8 = arith.addi %5, %7 : vector<256x128xi32>
    %c256_i32_2 = arith.constant 256 : i32
    %9 = vector.broadcast %c256_i32_2 : i32 to vector<256x128xi32>
    %10 = arith.cmpi slt, %8, %9 : vector<256x128xi32>
    %cst = arith.constant 0.000000e+00 : f32
    %11 = vector.broadcast %cst : f32 to vector<256x128xf32>
    %12 = arith.select %10, %4, %11 : vector<256x128xi1>, vector<256x128xf32>
    %c0_3 = arith.constant 0 : index
    %c0_4 = arith.constant 0 : index
    %13 = vector.load %arg2[%c0_3, %c0_4] : memref<8x128xf32, #tpu.memory_space<vmem>>, vector<1x128xf32>
    %cst_5 = arith.constant dense<0.000000e+00> : vector<128xf32>
    %14 = vector.multi_reduction <add>, %12, %cst_5 [0] : vector<256x128xf32> to vector<128xf32>
    %15 = vector.shape_cast %14 : vector<128xf32> to vector<1x128xf32>
    %16 = arith.addf %13, %15 : vector<1x128xf32>
    %c0_6 = arith.constant 0 : index
    %c0_7 = arith.constant 0 : index
    %17 = vector.load %arg2[%c0_6, %c0_7] : memref<8x128xf32, #tpu.memory_space<vmem>>, vector<1x128xf32>
    tpu.vector_store %arg2[%c0_6, %c0_7], %16 {strides = array<i32>} : memref<8x128xf32, #tpu.memory_space<vmem>>, vector<1x128xf32>,
    %c1 = arith.constant 1 : index
    %c0_8 = arith.constant 0 : index
    %18 = vector.load %arg2[%c1, %c0_8] : memref<8x128xf32, #tpu.memory_space<vmem>>, vector<1x128xf32>
    %19 = arith.mulf %12, %12 : vector<256x128xf32>
    %cst_9 = arith.constant dense<0.000000e+00> : vector<128xf32>
    %20 = vector.multi_reduction <add>, %19, %cst_9 [0] : vector<256x128xf32> to vector<128xf32>
    %21 = vector.shape_cast %20 : vector<128xf32> to vector<1x128xf32>
    %22 = arith.addf %18, %21 : vector<1x128xf32>
    %c1_10 = arith.constant 1 : index
    %c0_11 = arith.constant 0 : index
    %23 = vector.load %arg2[%c1_10, %c0_11] : memref<8x128xf32, #tpu.memory_space<vmem>>, vector<1x128xf32>
    tpu.vector_store %arg2[%c1_10, %c0_11], %22 {strides = array<i32>} : memref<8x128xf32, #tpu.memory_space<vmem>>, vector<1x128xf32>,
    return
  }
  func.func @transform_0(%arg0: i32) -> (i32, i32) {
    %c0_i32 = arith.constant 0 : i32
    %c0_i32_0 = arith.constant 0 : i32
    return %arg0, %c0_i32 : i32, i32
  }
  func.func @transform_1(%arg0: i32) -> (i32, i32) {
    %c0_i32 = arith.constant 0 : i32
    %c0_i32_0 = arith.constant 0 : i32
    %c0_i32_1 = arith.constant 0 : i32
    return %c0_i32, %c0_i32_0 : i32, i32
  }
}

</mosaic_0001>

<llo_original>
// kernel: _batch_stats.1
$region0: #{_batch_stats.1}
  #allocation0 [shape = 'u32[]', space=smem, size = 0x4, offset = 0x4, fixed_abs, tag = 'smem constant byte address 0x4 - core index']
  #allocation1 [shape = 'u32[144,128]{1,0:T(1,128)}', space=vmem, size = 0x12000, scoped, tag = 'internal scratch']
  %s0 = inlined_call_operand.vmem [shape: bf16[256,128], index: 0, kind: input, shape index: {}]
  %s1 = inlined_call_operand.vmem [shape: f32[8,128], index: 1, kind: output, shape index: {}]
  %s2 = sld [smem:[#allocation0]]
  $region18: #{_batch_stats.1} parent=0
    _
  %s4 = ssub.s32 1, %s2
  %s5 = scalar_select 0, %s4, %s2
  // Predicated region
  $region2: #{_batch_stats.1} parent=0 // pred_check
    _
  $region3: #{_batch_stats.1} parent=0 // pred_check_branch
    %7 = sbr.rel (0) target = $region5
  $region4: #{_batch_stats.1} parent=0 // pred_region
    _
  $region5: #{_batch_stats.1} parent=0 // pred_fallthru
    _
  %p8 = scmp.eq.s32.totalorder 0, 0
  // Predicated region
  $region6: #{_batch_stats.1} parent=0 // pred_check
    %p9 = pneg %p8
  $region7: #{_batch_stats.1} parent=0 // pred_check_branch
    %11 = sbr.rel (%p9) target = $region9
  $region8: #{_batch_stats.1} parent=0 // pred_region
    %12 = vst [vmem:[%s1] sm:$0xff] 0.0
  $region9: #{_batch_stats.1} parent=0 // pred_fallthru
    _
  %v13 = vld [vmem:[%s0] sm:$0xf]
  %v14 = vld [vmem:[%s0 + $0x4] sm:$0xf]
  %v15 = vld [vmem:[%s0 + $0x8] sm:$0xf]
  %v16 = vld [vmem:[%s0 + $0xc] sm:$0xf]
  %v17 = vld [vmem:[%s0 + $0x10] sm:$0xf]
  %v18 = vld [vmem:[%s0 + $0x14] sm:$0xf]
  %v19 = vld [vmem:[%s0 + $0x18] sm:$0xf]
  %v20 = vld [vmem:[%s0 + $0x1c] sm:$0xf]
  %v21 = vld [vmem:[%s0 + $0x20] sm:$0xf]
  %v22 = vld [vmem:[%s0 + $0x24] sm:$0xf]
  %v23 = vld [vmem:[%s0 + $0x28] sm:$0xf]
  %v24 = vld [vmem:[%s0 + $0x2c] sm:$0xf]
  %v25 = vld [vmem:[%s0 + $0x30] sm:$0xf]
  %v26 = vld [vmem:[%s0 + $0x34] sm:$0xf]
  %v27 = vld [vmem:[%s0 + $0x38] sm:$0xf]
  %v28 = vld [vmem:[%s0 + $0x3c] sm:$0xf]
  %v29 = vld [vmem:[%s0 + $0x40] sm:$0xf]
  %v30 = vld [vmem:[%s0 + $0x44] sm:$0xf]
  %v31 = vld [vmem:[%s0 + $0x48] sm:$0xf]
  %v32 = vld [vmem:[%s0 + $0x4c] sm:$0xf]
  %v33 = vld [vmem:[%s0 + $0x50] sm:$0xf]
  %v34 = vld [vmem:[%s0 + $0x54] sm:$0xf]
  %v35 = vld [vmem:[%s0 + $0x58] sm:$0xf]
  %v36 = vld [vmem:[%s0 + $0x5c] sm:$0xf]
  %v37 = vld [vmem:[%s0 + $0x60] sm:$0xf]
  %v38 = vld [vmem:[%s0 + $0x64] sm:$0xf]
  %v39 = vld [vmem:[%s0 + $0x68] sm:$0xf]
  %v40 = vld [vmem:[%s0 + $0x6c] sm:$0xf]
  %v41 = vld [vmem:[%s0 + $0x70] sm:$0xf]
  %v42 = vld [vmem:[%s0 + $0x74] sm:$0xf]
  %v43 = vld [vmem:[%s0 + $0x78] sm:$0xf]
  %v44 = vld [vmem:[%s0 + $0x7c] sm:$0xf]
  %v45 = vunpack.c.l.bf16 %v13
  %v46 = vunpack.c.l.bf16 %v14
  %v47 = vunpack.c.l.bf16 %v15
  %v48 = vunpack.c.l.bf16 %v16
  %v49 = vunpack.c.l.bf16 %v17
  %v50 = vunpack.c.l.bf16 %v18
  %v51 = vunpack.c.l.bf16 %v19
  %v52 = vunpack.c.l.bf16 %v20
  %v53 = vunpack.c.l.bf16 %v21
  %v54 = vunpack.c.l.bf16 %v22
  %v55 = vunpack.c.l.bf16 %v23
  %v56 = vunpack.c.l.bf16 %v24
  %v57 = vunpack.c.l.bf16 %v25
  %v58 = vunpack.c.l.bf16 %v26
  %v59 = vunpack.c.l.bf16 %v27
  %v60 = vunpack.c.l.bf16 %v28
  %v61 = vunpack.c.l.bf16 %v29
  %v62 = vunpack.c.l.bf16 %v30
  %v63 = vunpack.c.l.bf16 %v31
  %v64 = vunpack.c.l.bf16 %v32
  %v65 = vunpack.c.l.bf16 %v33
  %v66 = vunpack.c.l.bf16 %v34
  %v67 = vunpack.c.l.bf16 %v35
  %v68 = vunpack.c.l.bf16 %v36
  %v69 = vunpack.c.l.bf16 %v37
  %v70 = vunpack.c.l.bf16 %v38
  %v71 = vunpack.c.l.bf16 %v39
  %v72 = vunpack.c.l.bf16 %v40
  %v73 = vunpack.c.l.bf16 %v41
  %v74 = vunpack.c.l.bf16 %v42
  %v75 = vunpack.c.l.bf16 %v43
  %v76 = vunpack.c.l.bf16 %v44
  %v77 = vlaneseq
  %v78 = vshrl.u32 %v77, 7
  %v79 = vadd.s32 %v78, 8
  %v80 = vadd.s32 %v78, 16
  %v81 = vadd.s32 %v78, 24
  %v82 = vadd.s32 %v78, 32
  %v83 = vadd.s32 %v78, 40
  %v84 = vadd.s32 %v78, 48
  %v85 = vadd.s32 %v78, 56
  %v86 = vadd.s32 %v78, 64
  %v87 = vadd.s32 %v78, 72
  %v88 = vadd.s32 %v78, 80
  %v89 = vadd.s32 %v78, 88
  %v90 = vadd.s32 %v78, 96
  %v91 = vadd.s32 %v78, 104
  %v92 = vadd.s32 %v78, 112
  %v93 = vadd.s32 %v78, 120
  %v94 = vadd.s32 %v78, 128
  %v95 = vadd.s32 %v78, 136
  %v96 = vadd.s32 %v78, 144
  %v97 = vadd.s32 %v78, 152
  %v98 = vadd.s32 %v78, 160
  %v99 = vadd.s32 %v78, 168
  %v100 = vadd.s32 %v78, 176
  %v101 = vadd.s32 %v78, 184
  %v102 = vadd.s32 %v78, 192
  %v103 = vadd.s32 %v78, 200
  %v104 = vadd.s32 %v78, 208
  %v105 = vadd.s32 %v78, 216
  %v106 = vadd.s32 %v78, 224
  %v107 = vadd.s32 %v78, 232
  %v108 = vadd.s32 %v78, 240
  %v109 = vadd.s32 %v78, 248
  %s110 = smul.u32 0, 256
  %v111 = vstv %s110
  %v112 = vadd.s32 %v78, %v111
  %v113 = vadd.s32 %v79, %v111
  %v114 = vadd.s32 %v80, %v111
  %v115 = vadd.s32 %v81, %v111
  %v116 = vadd.s32 %v82, %v111
  %v117 = vadd.s32 %v83, %v111
  %v118 = vadd.s32 %v84, %v111
  %v119 = vadd.s32 %v85, %v111
  %v120 = vadd.s32 %v86, %v111
  %v121 = vadd.s32 %v87, %v111
  %v122 = vadd.s32 %v88, %v111
  %v123 = vadd.s32 %v89, %v111
  %v124 = vadd.s32 %v90, %v111
  %v125 = vadd.s32 %v91, %v111
  %v126 = vadd.s32 %v92, %v111
  %v127 = vadd.s32 %v93, %v111
  %v128 = vadd.s32 %v94, %v111
  %v129 = vadd.s32 %v95, %v111
  %v130 = vadd.s32 %v96, %v111
  %v131 = vadd.s32 %v97, %v111
  %v132 = vadd.s32 %v98, %v111
  %v133 = vadd.s32 %v99, %v111
  %v134 = vadd.s32 %v100, %v111
  %v135 = vadd.s32 %v101, %v111
  %v136 = vadd.s32 %v102, %v111
  %v137 = vadd.s32 %v103, %v111
  %v138 = vadd.s32 %v104, %v111
  %v139 = vadd.s32 %v105, %v111
  %v140 = vadd.s32 %v106, %v111
  %v141 = vadd.s32 %v107, %v111
  %v142 = vadd.s32 %v108, %v111
  %v143 = vadd.s32 %v109, %v111
  %vm144 = vcmp.lt.s32.totalorder %v112, 256
  %vm145 = vcmp.lt.s32.totalorder %v113, 256
  %vm146 = vcmp.lt.s32.totalorder %v114, 256
  %vm147 = vcmp.lt.s32.totalorder %v115, 256
  %vm148 = vcmp.lt.s32.totalorder %v116, 256
  %vm149 = vcmp.lt.s32.totalorder %v117, 256
  %vm150 = vcmp.lt.s32.totalorder %v118, 256
  %vm151 = vcmp.lt.s32.totalorder %v119, 256
  %vm152 = vcmp.lt.s32.totalorder %v120, 256
  %vm153 = vcmp.lt.s32.totalorder %v121, 256
  %vm154 = vcmp.lt.s32.totalorder %v122, 256
  %vm155 = vcmp.lt.s32.totalorder %v123, 256
  %vm156 = vcmp.lt.s32.totalorder %v124, 256
  %vm157 = vcmp.lt.s32.totalorder %v125, 256
  %vm158 = vcmp.lt.s32.totalorder %v126, 256
  %vm159 = vcmp.lt.s32.totalorder %v127, 256
  %vm160 = vcmp.lt.s32.totalorder %v128, 256
  %vm161 = vcmp.lt.s32.totalorder %v129, 256
  %vm162 = vcmp.lt.s32.totalorder %v130, 256
  %vm163 = vcmp.lt.s32.totalorder %v131, 256
  %vm164 = vcmp.lt.s32.totalorder %v132, 256
  %vm165 = vcmp.lt.s32.totalorder %v133, 256
  %vm166 = vcmp.lt.s32.totalorder %v134, 256
  %vm167 = vcmp.lt.s32.totalorder %v135, 256
  %vm168 = vcmp.lt.s32.totalorder %v136, 256
  %vm169 = vcmp.lt.s32.totalorder %v137, 256
  %vm170 = vcmp.lt.s32.totalorder %v138, 256
  %vm171 = vcmp.lt.s32.totalorder %v139, 256
  %vm172 = vcmp.lt.s32.totalorder %v140, 256
  %vm173 = vcmp.lt.s32.totalorder %v141, 256
  %vm174 = vcmp.lt.s32.totalorder %v142, 256
  %vm175 = vcmp.lt.s32.totalorder %v143, 256
  %v176 = vsel %vm144, %v45, 0.0
  %v177 = vsel %vm145, %v46, 0.0
  %v178 = vsel %vm146, %v47, 0.0
  %v179 = vsel %vm147, %v48, 0.0
  %v180 = vsel %vm148, %v49, 0.0
  %v181 = vsel %vm149, %v50, 0.0
  %v182 = vsel %vm150, %v51, 0.0
  %v183 = vsel %vm151, %v52, 0.0
  %v184 = vsel %vm152, %v53, 0.0
  %v185 = vsel %vm153, %v54, 0.0
  %v186 = vsel %vm154, %v55, 0.0
  %v187 = vsel %vm155, %v56, 0.0
  %v188 = vsel %vm156, %v57, 0.0
  %v189 = vsel %vm157, %v58, 0.0
  %v190 = vsel %vm158, %v59, 0.0
  %v191 = vsel %vm159, %v60, 0.0
  %v192 = vsel %vm160, %v61, 0.0
  %v193 = vsel %vm161, %v62, 0.0
  %v194 = vsel %vm162, %v63, 0.0
  %v195 = vsel %vm163, %v64, 0.0
  %v196 = vsel %vm164, %v65, 0.0
  %v197 = vsel %vm165, %v66, 0.0
  %v198 = vsel %vm166, %v67, 0.0
  %v199 = vsel %vm167, %v68, 0.0
  %v200 = vsel %vm168, %v69, 0.0
  %v201 = vsel %vm169, %v70, 0.0
  %v202 = vsel %vm170, %v71, 0.0
  %v203 = vsel %vm171, %v72, 0.0
  %v204 = vsel %vm172, %v73, 0.0
  %v205 = vsel %vm173, %v74, 0.0
  %v206 = vsel %vm174, %v75, 0.0
  %v207 = vsel %vm175, %v76, 0.0
  %v208 = vld [vmem:[%s1] sm:$0x1]
  %v209 = vadd.f32 %v176, %v177
  %v210 = vadd.f32 %v209, %v178
  %v211 = vadd.f32 %v210, %v179
  %v212 = vadd.f32 %v211, %v180
  %v213 = vadd.f32 %v212, %v181
  %v214 = vadd.f32 %v213, %v182
  %v215 = vadd.f32 %v214, %v183
  %v216 = vadd.f32 %v215, %v184
  %v217 = vadd.f32 %v216, %v185
  %v218 = vadd.f32 %v217, %v186
  %v219 = vadd.f32 %v218, %v187
  %v220 = vadd.f32 %v219, %v188
  %v221 = vadd.f32 %v220, %v189
  %v222 = vadd.f32 %v221, %v190
  %v223 = vadd.f32 %v222, %v191
  %v224 = vadd.f32 %v223, %v192
  %v225 = vadd.f32 %v224, %v193
  %v226 = vadd.f32 %v225, %v194
  %v227 = vadd.f32 %v226, %v195
  %v228 = vadd.f32 %v227, %v196
  %v229 = vadd.f32 %v228, %v197
  %v230 = vadd.f32 %v229, %v198
  %v231 = vadd.f32 %v230, %v199
  %v232 = vadd.f32 %v231, %v200
  %v233 = vadd.f32 %v232, %v201
  %v234 = vadd.f32 %v233, %v202
  %v235 = vadd.f32 %v234, %v203
  %v236 = vadd.f32 %v235, %v204
  %v237 = vadd.f32 %v236, %v205
  %v238 = vadd.f32 %v237, %v206
  %v239 = vadd.f32 %v238, %v207
  %v240 = vrot.slane %v239, 4
  %v241 = vadd.f32 %v239, %v240
  %v242 = vrot.slane %v241, 2
  %v243 = vadd.f32 %v241, %v242
  %v244 = vrot.slane %v243, 1
  %v245 = vadd.f32 %v243, %v244
  %v246 = vadd.f32 %v208, %v245
  %247 = vst [vmem:[%s1] sm:$0x1] %v246
  %v248 = vld [vmem:[%s1 + $0x1] sm:$0x1]
  %v249 = vmul.f32 %v176, %v176
  %v250 = vmul.f32 %v177, %v177
  %v251 = vmul.f32 %v178, %v178
  %v252 = vmul.f32 %v179, %v179
  %v253 = vmul.f32 %v180, %v180
  %v254 = vmul.f32 %v181, %v181
  %v255 = vmul.f32 %v182, %v182
  %v256 = vmul.f32 %v183, %v183
  %v257 = vmul.f32 %v184, %v184
  %v258 = vmul.f32 %v185, %v185
  %v259 = vmul.f32 %v186, %v186
  %v260 = vmul.f32 %v187, %v187
  %v261 = vmul.f32 %v188, %v188
  %v262 = vmul.f32 %v189, %v189
  %v263 = vmul.f32 %v190, %v190
  %v264 = vmul.f32 %v191, %v191
  %v265 = vmul.f32 %v192, %v192
  %v266 = vmul.f32 %v193, %v193
  %v267 = vmul.f32 %v194, %v194
  %v268 = vmul.f32 %v195, %v195
  %v269 = vmul.f32 %v196, %v196
  %v270 = vmul.f32 %v197, %v197
  %v271 = vmul.f32 %v198, %v198
  %v272 = vmul.f32 %v199, %v199
  %v273 = vmul.f32 %v200, %v200
  %v274 = vmul.f32 %v201, %v201
  %v275 = vmul.f32 %v202, %v202
  %v276 = vmul.f32 %v203, %v203
  %v277 = vmul.f32 %v204, %v204
  %v278 = vmul.f32 %v205, %v205
  %v279 = vmul.f32 %v206, %v206
  %v280 = vmul.f32 %v207, %v207
  %v281 = vadd.f32 %v249, %v250
  %v282 = vadd.f32 %v281, %v251
  %v283 = vadd.f32 %v282, %v252
  %v284 = vadd.f32 %v283, %v253
  %v285 = vadd.f32 %v284, %v254
  %v286 = vadd.f32 %v285, %v255
  %v287 = vadd.f32 %v286, %v256
  %v288 = vadd.f32 %v287, %v257
  %v289 = vadd.f32 %v288, %v258
  %v290 = vadd.f32 %v289, %v259
  %v291 = vadd.f32 %v290, %v260
  %v292 = vadd.f32 %v291, %v261
  %v293 = vadd.f32 %v292, %v262
  %v294 = vadd.f32 %v293, %v263
  %v295 = vadd.f32 %v294, %v264
  %v296 = vadd.f32 %v295, %v265
  %v297 = vadd.f32 %v296, %v266
  %v298 = vadd.f32 %v297, %v267
  %v299 = vadd.f32 %v298, %v268
  %v300 = vadd.f32 %v299, %v269
  %v301 = vadd.f32 %v300, %v270
  %v302 = vadd.f32 %v301, %v271
  %v303 = vadd.f32 %v302, %v272
  %v304 = vadd.f32 %v303, %v273
  %v305 = vadd.f32 %v304, %v274
  %v306 = vadd.f32 %v305, %v275
  %v307 = vadd.f32 %v306, %v276
  %v308 = vadd.f32 %v307, %v277
  %v309 = vadd.f32 %v308, %v278
  %v310 = vadd.f32 %v309, %v279
  %v311 = vadd.f32 %v310, %v280
  %v312 = vrot.slane %v311, 4
  %v313 = vadd.f32 %v311, %v312
  %v314 = vrot.slane %v313, 2
  %v315 = vadd.f32 %v313, %v314
  %v316 = vrot.slane %v315, 1
  %v317 = vadd.f32 %v315, %v316
  %v318 = vadd.f32 %v248, %v317
  %319 = vst [vmem:[%s1 + $0x1] sm:$0x1] %v318
  // Predicated region
  $region10: #{_batch_stats.1} parent=0 // pred_check
    _
  $region11: #{_batch_stats.1} parent=0 // pred_check_branch
    %321 = sbr.rel (0) target = $region13
  $region12: #{_batch_stats.1} parent=0 // pred_region
    _
  $region13: #{_batch_stats.1} parent=0 // pred_fallthru
    _
  // Predicated region
  $region14: #{_batch_stats.1} parent=0 // pred_check
    _
  $region15: #{_batch_stats.1} parent=0 // pred_check_branch
    %323 = sbr.rel (0) target = $region17
  $region16: #{_batch_stats.1} parent=0 // pred_region
    _
  $region17: #{_batch_stats.1} parent=0 // pred_fallthru
    _

</llo_original>
